<compile_context>
chip_gen: v7x
topology: tpu7x:2x2x1
jax: 0.10.0
libtpu: 0.0.40
codegen_flags: <defaults>
</compile_context>

<pallas_src>
import functools
import math

import jax
import jax.numpy as jnp
from jax import lax
from jax.experimental import pallas as pl
from jax.experimental.pallas import tpu as pltpu


# ----------------------------------------------------------------------------
# Kernel
# ----------------------------------------------------------------------------
def circle_logits_kernel(x_ref, w_ref, invx_ref, invw_ref, tgt_ref, out_ref,
                         *, gamma, m):
    # Raw (unnormalized) matmul on bf16 operands, f32 accumulation on the MXU.
    # x_ref: (TILE_B, F_pad), w_ref: (TILE_C, F_pad)  ->  (TILE_B, TILE_C)
    raw = lax.dot_general(
        x_ref[...], w_ref[...],
        (((1,), (1,)), ((), ())),
        preferred_element_type=jnp.float32,
    )

    # Apply hoisted inverse L2 norms (broadcast (TILE_B,1) and (1,TILE_C)).
    sim = raw * invx_ref[...] * invw_ref[...]

    # Circle-loss margin / scale math on the small sim tile.
    alpha_p = jnp.maximum(1.0 + m - sim, 0.0)
    alpha_n = jnp.maximum(sim + m, 0.0)
    s_p = gamma * alpha_p * (sim - (1.0 - m))   # delta_p = 1 - m
    s_n = gamma * alpha_n * (sim - m)           # delta_n = m

    # One-hot select without materializing a one-hot tensor.
    tb, tc = sim.shape
    class_ids = pl.program_id(0) * tc + lax.broadcasted_iota(
        jnp.int32, (tb, tc), 1)
    out = jnp.where(class_ids == tgt_ref[...], s_p, s_n)

    out_ref[...] = out.astype(out_ref.dtype)


# ----------------------------------------------------------------------------
# Wrapper
# ----------------------------------------------------------------------------
def _round_up(x, m):
    return (x + m - 1) // m * m


def _pick_tile(n, preferred, granularity):
    """Return (tile, padded_n) with tile % granularity == 0, padded_n % tile == 0."""
    n_pad = _round_up(n, granularity)
    if n_pad <= preferred:
        return n_pad, n_pad
    return preferred, _round_up(n_pad, preferred)


def circle_loss_forward(predicts, weight, targets, *, gamma=128.0, m=0.25,
                        compute_dtype=jnp.bfloat16, tile_b=256, tile_c=512):
    """Eval-mode forward of CircleLoss: returns pred_class_logits (B, C)."""
    B, F = predicts.shape
    C, F2 = weight.shape
    assert F == F2

    x32 = predicts.astype(jnp.float32)
    w32 = weight.astype(jnp.float32)

    # F.normalize(..., eps=1e-12) hoisted to per-row inverse norms (tiny cost
    # in plain JAX; done once instead of once per grid step / per batch tile).
    eps = 1e-12
    inv_x = 1.0 / jnp.maximum(
        jnp.sqrt(jnp.sum(x32 * x32, axis=1, keepdims=True)), eps)      # (B, 1)
    inv_w = 1.0 / jnp.maximum(
        jnp.sqrt(jnp.sum(w32 * w32, axis=1, keepdims=True)), eps)      # (C, 1)

    # Tile / pad sizes: lane-dense output (C multiple of 128), full-width MXU
    # contraction (F multiple of 128), sublane-aligned batch (multiple of 8).
    tb, B_pad = _pick_tile(B, tile_b, 8)
    tc, C_pad = _pick_tile(C, tile_c, 128)
    F_pad = _round_up(F, 128)

    x = jnp.pad(x32.astype(compute_dtype), ((0, B_pad - B), (0, F_pad - F)))
    w = jnp.pad(w32.astype(compute_dtype), ((0, C_pad - C), (0, F_pad - F)))
    inv_x_p = jnp.pad(inv_x, ((0, B_pad - B), (0, 0)))
    inv_w_row = jnp.pad(inv_w.reshape(1, C), ((0, 0), (0, C_pad - C)))
    tgt = jnp.pad(targets.reshape(B, 1).astype(jnp.int32),
                  ((0, B_pad - B), (0, 0)), constant_values=-1)

    grid = (C_pad // tc, B_pad // tb)   # batch axis innermost -> weight tile
                                        # stays resident across batch tiles.

    kernel = functools.partial(circle_logits_kernel,
                               gamma=float(gamma), m=float(m))
    out = pl.pallas_call(
        kernel,
        out_shape=jax.ShapeDtypeStruct((B_pad, C_pad), predicts.dtype),
        grid=grid,
        in_specs=[
            pl.BlockSpec((tb, F_pad), lambda c, b: (b, 0)),   # predicts
            pl.BlockSpec((tc, F_pad), lambda c, b: (c, 0)),   # weight
            pl.BlockSpec((tb, 1), lambda c, b: (b, 0)),       # 1/||x||
            pl.BlockSpec((1, tc), lambda c, b: (0, c)),       # 1/||w||
            pl.BlockSpec((tb, 1), lambda c, b: (b, 0)),       # targets
        ],
        out_specs=pl.BlockSpec((tb, tc), lambda c, b: (b, c)),
        compiler_params=pltpu.CompilerParams(
            dimension_semantics=("parallel", "parallel")),
    )(x, w, inv_x_p, inv_w_row, tgt)

    return out[:B, :C]


# ----------------------------------------------------------------------------
# References
# ----------------------------------------------------------------------------
def _reference_f32(predicts, weight, targets, gamma=128.0, m=0.25):
    """Module-faithful f32 reference (torch semantics)."""
    eps = 1e-12
    xn = predicts / jnp.maximum(
        jnp.linalg.norm(predicts, axis=-1, keepdims=True), eps)
    wn = weight / jnp.maximum(
        jnp.linalg.norm(weight, axis=-1, keepdims=True), eps)
    sim = xn @ wn.T
    alpha_p = jnp.maximum(-sim + 1.0 + m, 0.0)
    alpha_n = jnp.maximum(sim + m, 0.0)
    s_p = gamma * alpha_p * (sim - (1.0 - m))
    s_n = gamma * alpha_n * (sim - m)
    onehot = jax.nn.one_hot(targets, weight.shape[0], dtype=sim.dtype)
    return onehot * s_p + (1.0 - onehot) * s_n


def _reference_matched(predicts, weight, targets, gamma=128.0, m=0.25,
                       compute_dtype=jnp.bfloat16):
    """Same algorithm as the kernel (bf16 matmul, hoisted inverse norms)."""
    eps = 1e-12
    x32 = predicts.astype(jnp.float32)
    w32 = weight.astype(jnp.float32)
    inv_x = 1.0 / jnp.maximum(jnp.linalg.norm(x32, axis=1, keepdims=True), eps)
    inv_w = 1.0 / jnp.maximum(jnp.linalg.norm(w32, axis=1, keepdims=True), eps)
    raw = lax.dot_general(x32.astype(compute_dtype), w32.astype(compute_dtype),
                          (((1,), (1,)), ((), ())),
                          preferred_element_type=jnp.float32)
    sim = raw * inv_x * inv_w.T
    alpha_p = jnp.maximum(1.0 + m - sim, 0.0)
    alpha_n = jnp.maximum(sim + m, 0.0)
    s_p = gamma * alpha_p * (sim - (1.0 - m))
    s_n = gamma * alpha_n * (sim - m)
    onehot = jax.nn.one_hot(targets, weight.shape[0], dtype=sim.dtype)
    return onehot * s_p + (1.0 - onehot) * s_n


# ----------------------------------------------------------------------------
# Demo / self-test
# ----------------------------------------------------------------------------
if __name__ == "__main__":
    B, IN_FEAT, NUM_CLASSES = 8, 32, 16
    GAMMA, M = 128.0, 0.25

    key = jax.random.PRNGKey(0)
    k_pred, k_w, k_tgt = jax.random.split(key, 3)

    predicts = jax.random.normal(k_pred, (B, IN_FEAT), dtype=jnp.float32)

    # nn.init.kaiming_uniform_(weight, a=sqrt(5)) on (num_classes, in_feat):
    # bound = 1 / sqrt(in_feat)
    bound = 1.0 / math.sqrt(IN_FEAT)
    weight = jax.random.uniform(
        k_w, (NUM_CLASSES, IN_FEAT), dtype=jnp.float32,
        minval=-bound, maxval=bound)

    targets = jax.random.randint(k_tgt, (B,), 0, NUM_CLASSES, dtype=jnp.int32)

    out = circle_loss_forward(predicts, weight, targets, gamma=GAMMA, m=M)
    out = jax.block_until_ready(out)
    assert out.shape == (B, NUM_CLASSES)

    # Tight check vs the algorithm-matched reference (same bf16 matmul path).
    ref_matched = _reference_matched(predicts, weight, targets, GAMMA, M)
    assert jnp.allclose(out, ref_matched, atol=5e-3, rtol=1e-3), \
        "mismatch vs matched (bf16-matmul) reference"

    # Looser semantic sanity check vs the f32 torch-style reference
    # (difference is purely bf16 operand rounding on the MXU).
    ref_f32 = _reference_f32(predicts, weight, targets, GAMMA, M)
    assert jnp.allclose(out, ref_f32, atol=1.0, rtol=5e-2), \
        "mismatch vs f32 reference beyond bf16 rounding tolerance"

    print("KERNEL_OK")
</pallas_src>

<mosaic_0001>
module attributes {stable_mosaic.version = 11 : i64} {
  func.func @circle_logits_kernel(%arg0: i32, %arg1: i32, %arg2: memref<8x128xbf16, #tpu.memory_space<vmem>>, %arg3: memref<128x128xbf16, #tpu.memory_space<vmem>>, %arg4: memref<8x1xf32, #tpu.memory_space<vmem>>, %arg5: memref<1x128xf32, #tpu.memory_space<vmem>>, %arg6: memref<8x1xi32, #tpu.memory_space<vmem>>, %arg7: memref<8x128xf32, #tpu.memory_space<vmem>>) attributes {dimension_semantics = [#tpu.dimension_semantics<parallel>, #tpu.dimension_semantics<parallel>], iteration_bounds = array<i64: 1, 1>, scalar_prefetch = 0 : i64, scratch_operands = 0 : i64, tpu.core_type = #tpu.core_type<tc>, window_params = [{transform_indices = @transform_0, window_bounds = array<i64: 8, 128>}, {transform_indices = @transform_1, window_bounds = array<i64: 128, 128>}, {transform_indices = @transform_2, window_bounds = array<i64: 8, 1>}, {transform_indices = @transform_3, window_bounds = array<i64: 1, 128>}, {transform_indices = @transform_4, window_bounds = array<i64: 8, 1>}, {transform_indices = @transform_5, window_bounds = array<i64: 8, 128>}]} {
    %c0 = arith.constant 0 : index
    %c0_0 = arith.constant 0 : index
    %0 = vector.load %arg2[%c0, %c0_0] : memref<8x128xbf16, #tpu.memory_space<vmem>>, vector<8x128xbf16>
    %c0_1 = arith.constant 0 : index
    %c0_2 = arith.constant 0 : index
    %1 = vector.load %arg3[%c0_1, %c0_2] : memref<128x128xbf16, #tpu.memory_space<vmem>>, vector<128x128xbf16>
    %cst = arith.constant dense<0.000000e+00> : vector<8x128xf32>
    %2 = tpu.matmul %0, %1, %cst {dimension_numbers = #tpu.dot_dimension_numbers<[1], [1], [0], [0], [0, 0, 1, 0], [], []>} : vector<8x128xbf16>, vector<128x128xbf16>, vector<8x128xf32> -> vector<8x128xf32>
    %c0_3 = arith.constant 0 : index
    %c0_4 = arith.constant 0 : index
    %3 = vector.load %arg4[%c0_3, %c0_4] : memref<8x1xf32, #tpu.memory_space<vmem>>, vector<8x1xf32>
    %4 = vector.broadcast %3 : vector<8x1xf32> to vector<8x128xf32>
    %5 = arith.mulf %2, %4 : vector<8x128xf32>
    %c0_5 = arith.constant 0 : index
    %c0_6 = arith.constant 0 : index
    %6 = vector.load %arg5[%c0_5, %c0_6] : memref<1x128xf32, #tpu.memory_space<vmem>>, vector<1x128xf32>
    %7 = vector.broadcast %6 : vector<1x128xf32> to vector<8x128xf32>
    %8 = arith.mulf %5, %7 : vector<8x128xf32>
    %cst_7 = arith.constant 1.250000e+00 : f32
    %9 = vector.broadcast %cst_7 : f32 to vector<8x128xf32>
    %10 = arith.subf %9, %8 : vector<8x128xf32>
    %cst_8 = arith.constant 0.000000e+00 : f32
    %11 = vector.broadcast %cst_8 : f32 to vector<8x128xf32>
    %12 = arith.maximumf %10, %11 : vector<8x128xf32>
    %cst_9 = arith.constant 2.500000e-01 : f32
    %13 = vector.broadcast %cst_9 : f32 to vector<8x128xf32>
    %14 = arith.addf %8, %13 : vector<8x128xf32>
    %cst_10 = arith.constant 0.000000e+00 : f32
    %15 = vector.broadcast %cst_10 : f32 to vector<8x128xf32>
    %16 = arith.maximumf %14, %15 : vector<8x128xf32>
    %cst_11 = arith.constant 1.280000e+02 : f32
    %17 = vector.broadcast %cst_11 : f32 to vector<8x128xf32>
    %18 = arith.mulf %17, %12 : vector<8x128xf32>
    %cst_12 = arith.constant 7.500000e-01 : f32
    %19 = vector.broadcast %cst_12 : f32 to vector<8x128xf32>
    %20 = arith.subf %8, %19 : vector<8x128xf32>
    %21 = arith.mulf %18, %20 : vector<8x128xf32>
    %cst_13 = arith.constant 1.280000e+02 : f32
    %22 = vector.broadcast %cst_13 : f32 to vector<8x128xf32>
    %23 = arith.mulf %22, %16 : vector<8x128xf32>
    %cst_14 = arith.constant 2.500000e-01 : f32
    %24 = vector.broadcast %cst_14 : f32 to vector<8x128xf32>
    %25 = arith.subf %8, %24 : vector<8x128xf32>
    %26 = arith.mulf %23, %25 : vector<8x128xf32>
    %c128_i32 = arith.constant 128 : i32
    %27 = arith.muli %arg0, %c128_i32 : i32
    %28 = tpu.iota {dimensions = array<i32: 1>} : vector<8x128xi32>
    %29 = vector.broadcast %27 : i32 to vector<8x128xi32>
    %30 = arith.addi %29, %28 : vector<8x128xi32>
    %c0_15 = arith.constant 0 : index
    %c0_16 = arith.constant 0 : index
    %31 = vector.load %arg6[%c0_15, %c0_16] : memref<8x1xi32, #tpu.memory_space<vmem>>, vector<8x1xi32>
    %32 = vector.broadcast %31 : vector<8x1xi32> to vector<8x128xi32>
    %33 = arith.cmpi eq, %30, %32 : vector<8x128xi32>
    %34 = arith.select %33, %21, %26 : vector<8x128xi1>, vector<8x128xf32>
    %c0_17 = arith.constant 0 : index
    %c0_18 = arith.constant 0 : index
    %35 = vector.load %arg7[%c0_17, %c0_18] : memref<8x128xf32, #tpu.memory_space<vmem>>, vector<8x128xf32>
    tpu.vector_store %arg7[%c0_17, %c0_18], %34 {strides = array<i32>} : memref<8x128xf32, #tpu.memory_space<vmem>>, vector<8x128xf32>,
    return
  }
  func.func @transform_0(%arg0: i32, %arg1: i32) -> (i32, i32) {
    %c0_i32 = arith.constant 0 : i32
    %c0_i32_0 = arith.constant 0 : i32
    return %arg1, %c0_i32 : i32, i32
  }
  func.func @transform_1(%arg0: i32, %arg1: i32) -> (i32, i32) {
    %c0_i32 = arith.constant 0 : i32
    %c0_i32_0 = arith.constant 0 : i32
    return %arg0, %c0_i32 : i32, i32
  }
  func.func @transform_2(%arg0: i32, %arg1: i32) -> (i32, i32) {
    %c0_i32 = arith.constant 0 : i32
    %c0_i32_0 = arith.constant 0 : i32
    return %arg1, %c0_i32 : i32, i32
  }
  func.func @transform_3(%arg0: i32, %arg1: i32) -> (i32, i32) {
    %c0_i32 = arith.constant 0 : i32
    %c0_i32_0 = arith.constant 0 : i32
    return %c0_i32, %arg0 : i32, i32
  }
  func.func @transform_4(%arg0: i32, %arg1: i32) -> (i32, i32) {
    %c0_i32 = arith.constant 0 : i32
    %c0_i32_0 = arith.constant 0 : i32
    return %arg1, %c0_i32 : i32, i32
  }
  func.func @transform_5(%arg0: i32, %arg1: i32) -> (i32, i32) {
    %c0_i32 = arith.constant 0 : i32
    return %arg1, %arg0 : i32, i32
  }
}

</mosaic_0001>

<llo_original>
// kernel: tpu_custom_call.1
$region0: #{tpu_custom_call.1}
  #allocation0 [shape = 'u32[]', space=smem, size = 0x4, offset = 0x4, fixed_abs, tag = 'smem constant byte address 0x4 - core index']
  #allocation1 [shape = 'u32[144,128]{1,0:T(1,128)}', space=vmem, size = 0x12000, scoped, tag = 'internal scratch']
  %s0 = inlined_call_operand.vmem [shape: bf16[8,128], index: 0, kind: input, shape index: {}]
  %s1 = inlined_call_operand.hbm [shape: bf16[128,128], index: 1, kind: input, shape index: {}]
  %s2 = inlined_call_operand.vmem [shape: f32[8,1], index: 2, kind: input, shape index: {}]
  %s3 = inlined_call_operand.vmem [shape: f32[1,128], index: 3, kind: input, shape index: {}]
  %s4 = inlined_call_operand.vmem [shape: s32[8,1], index: 4, kind: input, shape index: {}]
  %s5 = inlined_call_operand.hbm [shape: f32[8,128], index: 5, kind: output, shape index: {}]
  %s6 = sld [smem:[#allocation0]]
  $region34: #{tpu_custom_call.1} parent=0
    _
  %s8 = ssub.s32 1, %s6
  %s9 = scalar_select 0, %s8, %s6
  $region1: #{tpu_custom_call.1} parent=0
    #allocation2 [shape = 'u8[32768]{0}', space=vmem, size = 0x8000, scoped, tag = 'input window, operand 1, single buffered']
    #allocation3 [shape = 's32[1]{0}', space=sflag, size = 0x4, scoped, tag = 'scoped memory for tpu_custom_call.1']
    #allocation4 [shape = 's32[1]{0}', space=sflag, size = 0x4, scoped, tag = 'scoped memory for tpu_custom_call.1']
    #allocation5 [shape = 'u8[4096]{0}', space=vmem, size = 0x1000, scoped, tag = 'output window, operand 0, single buffered']
    %10 = vsyncpa [#allocation3], 0
    %11 = vsyncpa [#allocation4], 0
    // Predicated region
    $region2: #{tpu_custom_call.1} parent=1 // pred_check
      _
    $region3: #{tpu_custom_call.1} parent=1 // pred_check_branch
      %13 = sbr.rel (0) target = $region5
    $region4: #{tpu_custom_call.1} parent=1 // pred_region
      _
    $region5: #{tpu_custom_call.1} parent=1 // pred_fallthru
      _
    // Predicated region
    $region6: #{tpu_custom_call.1} parent=1 // pred_check
      _
    $region7: #{tpu_custom_call.1} parent=1 // pred_check_branch
      %15 = sbr.rel (0) target = $region9
    $region8: #{tpu_custom_call.1} parent=1 // pred_region
      %s17 = ssub.s32 1024, 1024
      %18 = vsyncadd [#allocation3], %s17
      %s19 = sshll.u32 [#allocation2], 4
      %s20 = int_to_ptr.vmem [resolvable:$true] %s19
      %25 = dma.hbm_to_vmem [thread:$0]  %s1, 1024, %s20, [#allocation3], 64, 64, 4
    $region9: #{tpu_custom_call.1} parent=1 // pred_fallthru
      _
    // Predicated region
    $region10: #{tpu_custom_call.1} parent=1 // pred_check
      _
    $region11: #{tpu_custom_call.1} parent=1 // pred_check_branch
      %27 = sbr.rel (0) target = $region13
    $region12: #{tpu_custom_call.1} parent=1 // pred_region
      _
    $region13: #{tpu_custom_call.1} parent=1 // pred_fallthru
      _
    // Predicated region
    $region14: #{tpu_custom_call.1} parent=1 // pred_check
      _
    $region15: #{tpu_custom_call.1} parent=1 // pred_check_branch
      %29 = sbr.rel (0) target = $region17
    $region16: #{tpu_custom_call.1} parent=1 // pred_region
      _
    $region17: #{tpu_custom_call.1} parent=1 // pred_fallthru
      _
    // Predicated region
    $region18: #{tpu_custom_call.1} parent=1 // pred_check
      _
    $region19: #{tpu_custom_call.1} parent=1 // pred_check_branch
      %31 = sbr.rel (0) target = $region21
    $region20: #{tpu_custom_call.1} parent=1 // pred_region
      _
    $region21: #{tpu_custom_call.1} parent=1 // pred_fallthru
      _
    // Predicated region
    $region22: #{tpu_custom_call.1} parent=1 // pred_check
      _
    $region23: #{tpu_custom_call.1} parent=1 // pred_check_branch
      %33 = sbr.rel (0) target = $region25
    $region24: #{tpu_custom_call.1} parent=1 // pred_region
      %34 = dma.done [#allocation3], 1024
    $region25: #{tpu_custom_call.1} parent=1 // pred_fallthru
      _
    %v36 = vld [vmem:[%s0] sm:$0xf]
    %v37 = vld [vmem:[#allocation2] sm:$0xf]
    %v38 = vld [vmem:[#allocation2 + $0x4] sm:$0xf]
    %v39 = vld [vmem:[#allocation2 + $0x8] sm:$0xf]
    %v40 = vld [vmem:[#allocation2 + $0xc] sm:$0xf]
    %v41 = vld [vmem:[#allocation2 + $0x10] sm:$0xf]
    %v42 = vld [vmem:[#allocation2 + $0x14] sm:$0xf]
    %v43 = vld [vmem:[#allocation2 + $0x18] sm:$0xf]
    %v44 = vld [vmem:[#allocation2 + $0x1c] sm:$0xf]
    %v45 = vld [vmem:[#allocation2 + $0x20] sm:$0xf]
    %v46 = vld [vmem:[#allocation2 + $0x24] sm:$0xf]
    %v47 = vld [vmem:[#allocation2 + $0x28] sm:$0xf]
    %v48 = vld [vmem:[#allocation2 + $0x2c] sm:$0xf]
    %v49 = vld [vmem:[#allocation2 + $0x30] sm:$0xf]
    %v50 = vld [vmem:[#allocation2 + $0x34] sm:$0xf]
    %v51 = vld [vmem:[#allocation2 + $0x38] sm:$0xf]
    %v52 = vld [vmem:[#allocation2 + $0x3c] sm:$0xf]
    %v69 = vunpack.c.l.b16 %v37
    %v70 = vunpack.c.l.b16 %v38
    %v71 = vunpack.c.l.b16 %v39
    %v72 = vunpack.c.l.b16 %v40
    %v73 = vunpack.c.l.b16 %v41
    %v74 = vunpack.c.l.b16 %v42
    %v75 = vunpack.c.l.b16 %v43
    %v76 = vunpack.c.l.b16 %v44
    %v77 = vunpack.c.l.b16 %v45
    %v78 = vunpack.c.l.b16 %v46
    %v79 = vunpack.c.l.b16 %v47
    %v80 = vunpack.c.l.b16 %v48
    %v81 = vunpack.c.l.b16 %v49
    %v82 = vunpack.c.l.b16 %v50
    %v83 = vunpack.c.l.b16 %v51
    %v84 = vunpack.c.l.b16 %v52
    %v85 = vpack.c.b16 %v70, %v69
    %v86 = vpack.c.b16 %v72, %v71
    %v87 = vpack.c.b16 %v74, %v73
    %v88 = vpack.c.b16 %v76, %v75
    %v89 = vpack.c.b16 %v78, %v77
    %v90 = vpack.c.b16 %v80, %v79
    %v91 = vpack.c.b16 %v82, %v81
    %v92 = vpack.c.b16 %v84, %v83
    %101 = vmatprep.subr.bf16.mxu0 0
    %102 = vmatpush1.bf16.xpose.msra.mxu0 %v85
    %103 = vmatprep.subr.bf16.mxu0 0
    %104 = vmatpush1.bf16.xpose.msra.mxu0 %v86
    %105 = vmatprep.subr.bf16.mxu0 0
    %106 = vmatpush1.bf16.xpose.msra.mxu0 %v87
    %107 = vmatprep.subr.bf16.mxu0 0
    %108 = vmatpush1.bf16.xpose.msra.mxu0 %v88
    %109 = vmatprep.subr.bf16.mxu0 0
    %110 = vmatpush1.bf16.xpose.msra.mxu0 %v89
    %111 = vmatprep.subr.bf16.mxu0 0
    %112 = vmatpush1.bf16.xpose.msra.mxu0 %v90
    %113 = vmatprep.subr.bf16.mxu0 0
    %114 = vmatpush1.bf16.xpose.msra.mxu0 %v91
    %115 = vmatprep.subr.bf16.mxu0 0
    %116 = vmatpush1.bf16.xpose.msra.mxu0 %v92
    %117 = vmatprep.subr.bf16.mxu0 0
    %118 = vmatpush1.bf16.xpose.msra.mxu0 0
    %119 = vmatprep.subr.bf16.mxu0 0
    %120 = vmatpush1.bf16.xpose.msra.mxu0 0
    %121 = vmatprep.subr.bf16.mxu0 0
    %122 = vmatpush1.bf16.xpose.msra.mxu0 0
    %123 = vmatprep.subr.bf16.mxu0 0
    %124 = vmatpush1.bf16.xpose.msra.mxu0 0
    %125 = vmatprep.subr.bf16.mxu0 0
    %126 = vmatpush1.bf16.xpose.msra.mxu0 0
    %127 = vmatprep.subr.bf16.mxu0 0
    %128 = vmatpush1.bf16.xpose.msra.mxu0 0
    %129 = vmatprep.subr.bf16.mxu0 0
    %130 = vmatpush1.bf16.xpose.msra.mxu0 0
    %131 = vmatprep.subr.bf16.mxu0 0
    %132 = vmatpush1.bf16.xpose.msra.mxu0 0
    %133 = vmatprep.mubr.bf16.mxu0 0
    %134 = vmatmul.mubr.bf16.gmra.mrb[0].mxu0 %v36
    %v135 = vpop.f32.mrb[0].mxu0
    %v136 = vadd.f32 0.0, %v135
    %v137 = vpop.f32.mrb[0].mxu0
    %v138 = vpop.f32.mrb[0].mxu0
    %v139 = vpop.f32.mrb[0].mxu0
    %140 = vdwg.mxu0
    %v141 = vld [vmem:[%s2] sm:$0xff]
    %143 = vset.pattern.permute.xlu0 0
    %144 = vperm.xlu0 %143, %v141
    %v145 = vpop.permute.xlu0 %144
    %v147 = vmul.f32 %v136, %v145
    %v148 = vld [vmem:[%s3] sm:$0x1]
    %v150 = vlaneseq
    %v151 = vshrl.u32 %v150, 7
    %v152 = vsub.s32 0, %v151
    %v153 = vrot.slane %v148, %v152
    %v155 = vmul.f32 %v147, %v153
    %v156 = vsub.f32 1.25, %v155
    %v157 = vmax.f32 %v156, 0.0
    %v158 = vadd.f32 %v155, 0.25
    %v159 = vmax.f32 %v158, 0.0
    %v160 = vmul.f32 %v157, 128.0
    %v161 = vsub.f32 %v155, 0.75
    %v162 = vmul.f32 %v160, %v161
    %v163 = vmul.f32 %v159, 128.0
    %v164 = vsub.f32 %v155, 0.25
    %v165 = vmul.f32 %v163, %v164
    %s166 = smul.u32 0, 128
    %v167 = vlaneseq
    %v168 = vand.u32 %v167, 127
    %v169 = vstv %s166
    %v170 = vadd.s32 %v169, %v168
    %v171 = vld [vmem:[%s4] sm:$0xff]
    %172 = vset.pattern.permute.xlu0 0
    %173 = vperm.xlu0 %172, %v171
    %v174 = vpop.permute.xlu0 %173
    %vm175 = vcmp.eq.s32.totalorder %v170, %v174
    %v176 = vsel %vm175, %v162, %v165
    %177 = vst [vmem:[#allocation5] sm:$0xff] %v176
    // Predicated region
    $region26: #{tpu_custom_call.1} parent=1 // pred_check
      _
    $region27: #{tpu_custom_call.1} parent=1 // pred_check_branch
      %179 = sbr.rel (0) target = $region29
    $region28: #{tpu_custom_call.1} parent=1 // pred_region
      %s181 = ssub.s32 128, 128
      %182 = vsyncadd [#allocation4], %s181
      %s184 = sshll.u32 [#allocation5], 4
      %s185 = int_to_ptr.vmem [resolvable:$true] %s184
      %187 = dma.vmem_to_hbm [thread:$0]  %s185, 128, %s5, [#allocation4]
    $region29: #{tpu_custom_call.1} parent=1 // pred_fallthru
      _
    // Predicated region
    $region30: #{tpu_custom_call.1} parent=1 // pred_check
      _
    $region31: #{tpu_custom_call.1} parent=1 // pred_check_branch
      %189 = sbr.rel (0) target = $region33
    $region32: #{tpu_custom_call.1} parent=1 // pred_region
      %190 = dma.done [#allocation4], 128
    $region33: #{tpu_custom_call.1} parent=1 // pred_fallthru
      _
    %191 = vsyncpa [#allocation3], 1
    %192 = vsyncpa [#allocation4], 1

</llo_original>
